<compile_context>
chip_gen: v7x
topology: tpu7x:2x2x1
jax: 0.10.0
libtpu: 0.0.40
codegen_flags: <defaults>
</compile_context>

<pallas_src>
import functools

import jax
import jax.numpy as jnp
from jax.experimental import pallas as pl
from jax.experimental.pallas import tpu as pltpu


def _round_up(n, m):
    return ((n + m - 1) // m) * m


def _cpad(c):
    return _round_up(c, 128)


_VMEM_LIMIT = 32 * 1024 * 1024  # safe on v5e/v6e (128 MiB) and v7x (64 MiB)


# ---------------------------------------------------------------------------
# Pallas kernel 1: matmul + folded-BN scale/bias (+ residual) (+ ReLU)
# ---------------------------------------------------------------------------
def _mm_bn_kernel(x_ref, w_ref, s_ref, b_ref, *rest, relu, has_res):
    if has_res:
        r_ref, o_ref = rest
    else:
        (o_ref,) = rest
    acc = jnp.dot(x_ref[...], w_ref[...], preferred_element_type=jnp.float32)
    acc = acc * s_ref[...] + b_ref[...]
    if has_res:
        acc = acc + r_ref[...].astype(jnp.float32)
    if relu:
        acc = jnp.maximum(acc, 0.0)
    o_ref[...] = acc.astype(o_ref.dtype)


@functools.partial(jax.jit, static_argnames=("relu", "out_dtype"))
def matmul_bn(x2d, w2d, scale, bias, *, relu, residual=None,
              out_dtype=jnp.bfloat16):
    """(M,K)@(K,C) * scale + bias (+ residual) (+ReLU). bf16 MXU, f32 acc."""
    M, K = x2d.shape
    C = w2d.shape[1]
    # 256-row tiles unless K is huge (keeps the double-buffered x block small)
    tm_cap = 256 if K <= 8192 else 128
    tm = min(tm_cap, _round_up(max(M, 1), 8))
    Mp = _round_up(M, tm)
    xp = jnp.pad(x2d.astype(jnp.bfloat16), ((0, Mp - M), (0, 0)))
    args = [xp, w2d.astype(jnp.bfloat16),
            scale.reshape(1, C).astype(jnp.float32),
            bias.reshape(1, C).astype(jnp.float32)]
    in_specs = [pl.BlockSpec((tm, K), lambda i: (i, 0)),
                pl.BlockSpec((K, C), lambda i: (0, 0)),   # weight resident
                pl.BlockSpec((1, C), lambda i: (0, 0)),
                pl.BlockSpec((1, C), lambda i: (0, 0))]
    has_res = residual is not None
    if has_res:
        rp = jnp.pad(residual.astype(jnp.bfloat16), ((0, Mp - M), (0, 0)))
        args.append(rp)
        in_specs.append(pl.BlockSpec((tm, C), lambda i: (i, 0)))
    out = pl.pallas_call(
        functools.partial(_mm_bn_kernel, relu=relu, has_res=has_res),
        out_shape=jax.ShapeDtypeStruct((Mp, C), out_dtype),
        grid=(Mp // tm,),
        in_specs=in_specs,
        out_specs=pl.BlockSpec((tm, C), lambda i: (i, 0)),
        compiler_params=pltpu.CompilerParams(
            dimension_semantics=("parallel",),
            vmem_limit_bytes=_VMEM_LIMIT),
    )(*args)
    return out[:M]


# ---------------------------------------------------------------------------
# Pallas kernel 2: direct 3x3 stride-1 conv + BN (+ReLU), no HBM im2col.
# The padded activation is flattened to rows; for an output-row tile we DMA a
# single contiguous (tm + 2*Wp + 2)-row window and the 9 taps are row-shifted
# slices of that VMEM window.  Manual double-buffered DMA (pl.ANY input).
# ---------------------------------------------------------------------------
def _conv3x3_kernel(x_hbm, w_ref, s_ref, b_ref, o_ref, buf, sem,
                    *, tm, tin, wp, relu):
    i = pl.program_id(0)
    ni = pl.num_programs(0)

    def win_copy(idx, slot):
        start = pl.multiple_of(idx * tm, 8)
        return pltpu.make_async_copy(x_hbm.at[pl.ds(start, tin), :],
                                     buf.at[slot], sem.at[slot])

    @pl.when(i == 0)
    def _():
        win_copy(0, 0).start()

    @pl.when(i + 1 < ni)
    def _():
        win_copy(i + 1, (i + 1) % 2).start()

    win_copy(i, i % 2).wait()
    slot = i % 2

    acc = None
    for kh in range(3):
        for kw in range(3):
            off = kh * wp + kw
            a = buf[slot, pl.ds(off, tm), :]
            d = jnp.dot(a, w_ref[kh * 3 + kw],
                        preferred_element_type=jnp.float32)
            acc = d if acc is None else acc + d
    acc = acc * s_ref[...] + b_ref[...]
    if relu:
        acc = jnp.maximum(acc, 0.0)
    o_ref[...] = acc.astype(o_ref.dtype)


@functools.partial(jax.jit, static_argnames=("relu",))
def conv3x3_s1_bn(x, w, scale, bias, *, relu):
    N, H, W, Cin = x.shape
    Cout = w.shape[-1]
    Hp, Wp = H + 2, W + 2
    xp = jnp.pad(x, ((0, 0), (1, 1), (1, 1), (0, 0)))
    xf = xp.reshape(N * Hp * Wp, Cin).astype(jnp.bfloat16)
    npos = N * Hp * Wp
    tm = min(256, _round_up(npos, 8))
    ni = -(-npos // tm)
    tin = _round_up(tm + 2 * Wp + 2, 8)
    total_rows = ni * tm + tin
    top = Wp + 1                       # shift so all 9 tap offsets are >= 0
    xs = jnp.pad(xf, ((top, total_rows - top - npos), (0, 0)))
    w9 = w.reshape(9, Cin, Cout).astype(jnp.bfloat16)
    out = pl.pallas_call(
        functools.partial(_conv3x3_kernel, tm=tm, tin=tin, wp=Wp, relu=relu),
        out_shape=jax.ShapeDtypeStruct((ni * tm, Cout), jnp.bfloat16),
        grid=(ni,),
        in_specs=[pl.BlockSpec(memory_space=pl.ANY),
                  pl.BlockSpec((9, Cin, Cout), lambda i: (0, 0, 0)),
                  pl.BlockSpec((1, Cout), lambda i: (0, 0)),
                  pl.BlockSpec((1, Cout), lambda i: (0, 0))],
        out_specs=pl.BlockSpec((tm, Cout), lambda i: (i, 0)),
        scratch_shapes=[pltpu.VMEM((2, tin, Cin), jnp.bfloat16),
                        pltpu.SemaphoreType.DMA((2,))],
        compiler_params=pltpu.CompilerParams(
            # manual double buffering is primed at i==0 -> keep grid sequential
            dimension_semantics=("arbitrary",),
            vmem_limit_bytes=_VMEM_LIMIT),
    )(xs, w9, scale.reshape(1, Cout).astype(jnp.float32),
      bias.reshape(1, Cout).astype(jnp.float32))
    out = out[:npos].reshape(N, Hp, Wp, Cout)
    return out[:, 1:1 + H, 1:1 + W, :]   # drop the (garbage) border positions


# ---------------------------------------------------------------------------
# Pallas kernel 3: 3-way elementwise max (final stage of the 3x3/s2 maxpool)
# ---------------------------------------------------------------------------
def _max3_kernel(a_ref, b_ref, c_ref, o_ref):
    o_ref[...] = jnp.maximum(jnp.maximum(a_ref[...], b_ref[...]), c_ref[...])


@jax.jit
def max3_rows(a, b, c):
    M, C = a.shape
    tm = min(512, _round_up(M, 8))       # big tile: purely HBM-bandwidth bound
    Mp = _round_up(M, tm)
    pad = ((0, Mp - M), (0, 0))
    ap, bp, cp = (jnp.pad(t, pad) for t in (a, b, c))
    out = pl.pallas_call(
        _max3_kernel,
        out_shape=jax.ShapeDtypeStruct((Mp, C), a.dtype),
        grid=(Mp // tm,),
        in_specs=[pl.BlockSpec((tm, C), lambda i: (i, 0))] * 3,
        out_specs=pl.BlockSpec((tm, C), lambda i: (i, 0)),
        compiler_params=pltpu.CompilerParams(
            dimension_semantics=("parallel",),
            vmem_limit_bytes=_VMEM_LIMIT),
    )(ap, bp, cp)
    return out[:M]


# ---------------------------------------------------------------------------
# JAX glue: conv wrapper, maxpool, bottleneck, full network, FDL loss
# ---------------------------------------------------------------------------
def conv_bn(x, w, scale, bias, stride, padding, relu, residual=None):
    """x: NHWC (bf16), w: (KH,KW,Cin,Cout).  Conv + folded BN (+res) (+ReLU)."""
    KH, KW, Cin, Cout = w.shape
    if KH == 3 and KW == 3 and stride == 1 and residual is None:
        return conv3x3_s1_bn(x, w, scale, bias, relu=relu)
    N, H, Wi, _ = x.shape
    if padding:
        x = jnp.pad(x, ((0, 0), (padding, padding), (padding, padding), (0, 0)))
    Hp, Wp = x.shape[1], x.shape[2]
    OH = (Hp - KH) // stride + 1
    OW = (Wp - KW) // stride + 1
    if KH == 1 and KW == 1:
        x2d = x[:, ::stride, ::stride, :][:, :OH, :OW, :].reshape(N * OH * OW, Cin)
    else:
        # TODO(synk): 7x7 stem + the two stride-2 3x3 convs still use XLA im2col
        # (tiny here and fused inside the surrounding jit).
        cols = [x[:, kh:kh + stride * OH:stride, kw:kw + stride * OW:stride, :]
                for kh in range(KH) for kw in range(KW)]
        x2d = jnp.concatenate(cols, axis=-1).reshape(N * OH * OW, KH * KW * Cin)
    w2d = w.reshape(KH * KW * Cin, Cout)
    res2d = residual.reshape(-1, Cout) if residual is not None else None
    y = matmul_bn(x2d, w2d, scale, bias, relu=relu, residual=res2d)
    return y.reshape(N, OH, OW, Cout)


@jax.jit
def maxpool_3x3_s2_p1(x):
    N, H, W, C = x.shape
    neg = jnp.finfo(x.dtype).min
    xp = jnp.pad(x, ((0, 0), (1, 1), (1, 1), (0, 0)), constant_values=neg)
    OH = (H + 2 - 3) // 2 + 1
    OW = (W + 2 - 3) // 2 + 1
    # TODO(synk): kw-reduction is a fused XLA max; only the kh-reduction runs in Pallas.
    cm = jnp.maximum(jnp.maximum(xp[:, :, 0:2 * OW:2, :],
                                 xp[:, :, 1:1 + 2 * OW:2, :]),
                     xp[:, :, 2:2 + 2 * OW:2, :])          # (N, Hp, OW, C)
    a = cm[:, 0:2 * OH:2].reshape(-1, C)
    b = cm[:, 1:1 + 2 * OH:2].reshape(-1, C)
    c = cm[:, 2:2 + 2 * OH:2].reshape(-1, C)
    y = max3_rows(a, b, c)
    return y.reshape(N, OH, OW, C)


@functools.partial(jax.jit, static_argnames=("stride",))
def bottleneck(x, p, *, stride):
    if 'down_w' in p:
        identity = conv_bn(x, p['down_w'], p['down_s'], p['down_b'],
                           stride, 0, relu=False)
    else:
        identity = x
    out = conv_bn(x, p['conv1_w'], p['bn1_s'], p['bn1_b'], 1, 0, relu=True)
    out = conv_bn(out, p['conv2_w'], p['bn2_s'], p['bn2_b'], stride, 1, relu=True)
    # conv3 matmul fuses BN + residual add + ReLU in its epilogue.
    out = conv_bn(out, p['conv3_w'], p['bn3_s'], p['bn3_b'], 1, 0, relu=True,
                  residual=identity)
    return out


@jax.jit
def _stem(x_nchw, mean, conv1_w, bn1_s, bn1_b):
    """normalize -> conv1(7x7/s2, folded BN+ReLU) -> maxpool.  One XLA program."""
    x = jnp.transpose(x_nchw, (0, 2, 3, 1)).astype(jnp.float32)   # NHWC
    x = (x - mean.reshape(1, 1, 1, 3)).astype(jnp.bfloat16)
    h = conv_bn(x, conv1_w, bn1_s, bn1_b, stride=2, padding=3, relu=True)
    return h, maxpool_3x3_s2_p1(h)


# -------------------- deterministic synthetic parameters --------------------
def _conv_w(key, kh, kw, cin_phys, cout):
    fan_in = kh * kw * cin_phys
    w = jax.random.normal(key, (kh, kw, cin_phys, cout)) * jnp.sqrt(1.0 / fan_in)
    w = jnp.pad(w, ((0, 0), (0, 0), (0, 0), (0, _cpad(cout) - cout)))
    return w.astype(jnp.bfloat16)


def _bn_fold(key, c, eps=1e-5):
    k1, k2, k3, k4 = jax.random.split(key, 4)
    gamma = jax.random.uniform(k1, (c,), minval=0.8, maxval=1.2)
    beta = 0.1 * jax.random.normal(k2, (c,))
    mean = 0.1 * jax.random.normal(k3, (c,))
    var = jax.random.uniform(k4, (c,), minval=0.5, maxval=1.5)
    scale = gamma / jnp.sqrt(var + eps)
    bias = beta - mean * scale
    cp = _cpad(c)
    scale = jnp.pad(scale, (0, cp - c))
    bias = jnp.pad(bias, (0, cp - c))
    return scale.astype(jnp.float32), bias.astype(jnp.float32)


def _make_bottleneck_params(key, inp_phys, planes, downsample):
    ks = jax.random.split(key, 8)
    p_phys = _cpad(planes)
    p = {
        'conv1_w': _conv_w(ks[0], 1, 1, inp_phys, planes),
        'conv2_w': _conv_w(ks[1], 3, 3, p_phys, planes),
        'conv3_w': _conv_w(ks[2], 1, 1, p_phys, planes * 4),
    }
    p['bn1_s'], p['bn1_b'] = _bn_fold(ks[3], planes)
    p['bn2_s'], p['bn2_b'] = _bn_fold(ks[4], planes)
    p['bn3_s'], p['bn3_b'] = _bn_fold(ks[5], planes * 4)
    if downsample:
        p['down_w'] = _conv_w(ks[6], 1, 1, inp_phys, planes * 4)
        p['down_s'], p['down_b'] = _bn_fold(ks[7], planes * 4)
    return p


def _make_layer_params(key, in_phys, planes, blocks, stride):
    out_phys = _cpad(planes * 4)
    layer = []
    keys = jax.random.split(key, blocks)
    for i in range(blocks):
        inp = in_phys if i == 0 else out_phys
        s = stride if i == 0 else 1
        down = (i == 0) and (s != 1 or inp != out_phys)
        layer.append((_make_bottleneck_params(keys[i], inp, planes, down), s))
    return layer


def make_resnet101_params(key):
    k = jax.random.split(key, 6)
    mean = jnp.array([0.485, 0.456, 0.406], jnp.float32)
    inv_std = 1.0 / jnp.array([0.229, 0.224, 0.225], jnp.float32)
    # Fold 1/std into the stem weight; the mean subtraction stays a trivial
    # fused XLA op (exactness with zero-padded normalized borders).
    conv1_w = (_conv_w(k[0], 7, 7, 3, 64).astype(jnp.float32)
               * inv_std.reshape(1, 1, 3, 1)).astype(jnp.bfloat16)
    params = {'mean': mean, 'conv1_w': conv1_w}
    params['bn1_s'], params['bn1_b'] = _bn_fold(k[1], 64)
    # resnet101: layers = [3, 4, 23, 3]; stages 2-4 use layer1..layer3
    params['layer1'] = _make_layer_params(k[2], 128, 64, 3, 1)
    params['layer2'] = _make_layer_params(k[3], 256, 128, 4, 2)
    params['layer3'] = _make_layer_params(k[4], 512, 256, 23, 2)
    return params


# ------------------------------ forward pass --------------------------------
RESNET_CHNS = [64, 256, 512, 1024]


def resnet_features(x_nchw, params):
    """Matches ResNet.get_features: [h_relu1_2, h_relu2_2, h_relu3_3, h_relu4_3]
    in NCHW f32 with channels [64, 256, 512, 1024]."""
    h1, h = _stem(x_nchw, params['mean'], params['conv1_w'],
                  params['bn1_s'], params['bn1_b'])
    for p, s in params['layer1']:
        h = bottleneck(h, p, stride=s)
    h2 = h
    for p, s in params['layer2']:
        h = bottleneck(h, p, stride=s)
    h3 = h
    for p, s in params['layer3']:
        h = bottleneck(h, p, stride=s)
    h4 = h
    feats = []
    for t, c in zip((h1, h2, h3, h4), RESNET_CHNS):
        feats.append(jnp.transpose(t[..., :c], (0, 3, 1, 2)).astype(jnp.float32))
    return feats


# ------------------------------- FDL loss ------------------------------------
def make_projections(key, chns, num_proj=24, patch=4):
    rands = []
    for i, c in enumerate(chns):
        k = jax.random.fold_in(key, i)
        r = jax.random.normal(k, (num_proj, c, patch, patch), jnp.float32)
        nrm = jnp.linalg.norm(r.reshape(num_proj, -1), axis=1)
        rands.append(r / nrm.reshape(num_proj, 1, 1, 1))
    return rands


def project(feat_nchw, rand_oihw, stride=1):
    """F.conv2d(feat, rand, stride) -> (N, P, OH*OW), via Pallas matmul."""
    x = jnp.transpose(feat_nchw, (0, 2, 3, 1))          # NHWC
    w = jnp.transpose(rand_oihw, (2, 3, 1, 0))           # (kh, kw, C, P)
    N, H, W, C = x.shape
    KH, KW = w.shape[0], w.shape[1]
    P = w.shape[-1]
    OH = (H - KH) // stride + 1
    OW = (W - KW) // stride + 1
    cols = [x[:, kh:kh + stride * OH:stride, kw:kw + stride * OW:stride, :]
            for kh in range(KH) for kw in range(KW)]
    x2d = jnp.concatenate(cols, axis=-1).reshape(N * OH * OW, KH * KW * C)
    w2d = w.reshape(KH * KW * C, P)
    y = matmul_bn(x2d, w2d, jnp.ones((P,), jnp.float32),
                  jnp.zeros((P,), jnp.float32), relu=False,
                  out_dtype=jnp.float32)
    y = y.reshape(N, OH, OW, P)
    return jnp.transpose(y, (0, 3, 1, 2)).reshape(N, P, OH * OW)


@functools.partial(jax.jit, static_argnames=("stride",))
def _stage_score(fx, fy, rand, phase_weight, *, stride):
    # TODO(synk): FFT / angle / sort have no Pallas equivalent; plain JAX
    # (fused into one XLA program per stage; the projection conv is Pallas).
    fft_x = jnp.fft.fftn(fx, axes=(-2, -1))
    fft_y = jnp.fft.fftn(fy, axes=(-2, -1))
    s = 0.0
    for ax, ay, wgt in ((jnp.abs(fft_x), jnp.abs(fft_y), 1.0),
                        (jnp.angle(fft_x), jnp.angle(fft_y), phase_weight)):
        px = jnp.sort(project(ax, rand, stride), axis=-1)
        py = jnp.sort(project(ay, rand, stride), axis=-1)
        s = s + wgt * jnp.abs(px - py).mean(axis=(1, 2))
    return s


def fdl_loss_value(x, y, params, rands, stride=1, phase_weight=1.0,
                   loss_weight=1.0):
    fx = resnet_features(x, params)
    fy = resnet_features(y, params)
    score = 0.0
    for i in range(len(fx)):
        score = score + _stage_score(fx[i], fy[i], rands[i], phase_weight,
                                     stride=stride)
    score = score.mean() * 0.01
    return score * loss_weight


if __name__ == "__main__":
    key = jax.random.PRNGKey(0)
    kx, ky, kp, kr = jax.random.split(key, 4)
    # 64x64 input so the deepest feature (4x4) still admits the 4x4 SWD patch.
    x = jax.random.uniform(kx, (2, 3, 64, 64), dtype=jnp.float32)
    y = jax.random.uniform(ky, (2, 3, 64, 64), dtype=jnp.float32)
    params = make_resnet101_params(kp)
    rands = make_projections(kr, RESNET_CHNS, num_proj=24, patch=4)

    feats = resnet_features(x, params)
    feats = [jax.block_until_ready(f) for f in feats]
    expected = [(2, 64, 32, 32), (2, 256, 16, 16), (2, 512, 8, 8), (2, 1024, 4, 4)]
    assert [tuple(f.shape) for f in feats] == expected, \
        [tuple(f.shape) for f in feats]
    assert all(bool(jnp.all(jnp.isfinite(f))) for f in feats)

    loss = fdl_loss_value(x, y, params, rands)
    loss = jax.block_until_ready(loss)
    assert loss.shape == () and bool(jnp.isfinite(loss))
    print("KERNEL_OK")
</pallas_src>

<mosaic_0001>
module attributes {stable_mosaic.version = 11 : i64} {
  func.func @_mm_bn_kernel(%arg0: i32, %arg1: memref<256x147xbf16, #tpu.memory_space<vmem>>, %arg2: memref<147x128xbf16, #tpu.memory_space<vmem>>, %arg3: memref<1x128xf32, #tpu.memory_space<vmem>>, %arg4: memref<1x128xf32, #tpu.memory_space<vmem>>, %arg5: memref<256x128xbf16, #tpu.memory_space<vmem>>) attributes {dimension_semantics = [#tpu.dimension_semantics<parallel>], iteration_bounds = array<i64: 8>, scalar_prefetch = 0 : i64, scratch_operands = 0 : i64, tpu.core_type = #tpu.core_type<tc>, window_params = [{transform_indices = @transform_0, window_bounds = array<i64: 256, 147>}, {pipeline_mode = #tpu.pipeline_mode<synchronous>, transform_indices = @transform_1, window_bounds = array<i64: 147, 128>}, {pipeline_mode = #tpu.pipeline_mode<synchronous>, transform_indices = @transform_2, window_bounds = array<i64: 1, 128>}, {pipeline_mode = #tpu.pipeline_mode<synchronous>, transform_indices = @transform_3, window_bounds = array<i64: 1, 128>}, {transform_indices = @transform_4, window_bounds = array<i64: 256, 128>}]} {
    %c0 = arith.constant 0 : index
    %c0_0 = arith.constant 0 : index
    %0 = vector.load %arg1[%c0, %c0_0] : memref<256x147xbf16, #tpu.memory_space<vmem>>, vector<256x147xbf16>
    %c0_1 = arith.constant 0 : index
    %c0_2 = arith.constant 0 : index
    %1 = vector.load %arg2[%c0_1, %c0_2] : memref<147x128xbf16, #tpu.memory_space<vmem>>, vector<147x128xbf16>
    %cst = arith.constant dense<0.000000e+00> : vector<256x128xf32>
    %2 = tpu.matmul %0, %1, %cst {dimension_numbers = #tpu.dot_dimension_numbers<[1], [0], [0], [1], [0, 0, 1, 1], [], []>} : vector<256x147xbf16>, vector<147x128xbf16>, vector<256x128xf32> -> vector<256x128xf32>
    %c0_3 = arith.constant 0 : index
    %c0_4 = arith.constant 0 : index
    %3 = vector.load %arg3[%c0_3, %c0_4] : memref<1x128xf32, #tpu.memory_space<vmem>>, vector<1x128xf32>
    %4 = vector.broadcast %3 : vector<1x128xf32> to vector<256x128xf32>
    %5 = arith.mulf %2, %4 : vector<256x128xf32>
    %c0_5 = arith.constant 0 : index
    %c0_6 = arith.constant 0 : index
    %6 = vector.load %arg4[%c0_5, %c0_6] : memref<1x128xf32, #tpu.memory_space<vmem>>, vector<1x128xf32>
    %7 = vector.broadcast %6 : vector<1x128xf32> to vector<256x128xf32>
    %8 = arith.addf %5, %7 : vector<256x128xf32>
    %cst_7 = arith.constant 0.000000e+00 : f32
    %9 = vector.broadcast %cst_7 : f32 to vector<256x128xf32>
    %10 = arith.maximumf %8, %9 : vector<256x128xf32>
    %11 = arith.truncf %10 : vector<256x128xf32> to vector<256x128xbf16>
    %c0_8 = arith.constant 0 : index
    %c0_9 = arith.constant 0 : index
    %12 = vector.load %arg5[%c0_8, %c0_9] : memref<256x128xbf16, #tpu.memory_space<vmem>>, vector<256x128xbf16>
    tpu.vector_store %arg5[%c0_8, %c0_9], %11 {strides = array<i32>} : memref<256x128xbf16, #tpu.memory_space<vmem>>, vector<256x128xbf16>,
    return
  }
  func.func @transform_0(%arg0: i32) -> (i32, i32) {
    %c0_i32 = arith.constant 0 : i32
    %c0_i32_0 = arith.constant 0 : i32
    return %arg0, %c0_i32 : i32, i32
  }
  func.func @transform_1(%arg0: i32) -> (i32, i32) {
    %c0_i32 = arith.constant 0 : i32
    %c0_i32_0 = arith.constant 0 : i32
    %c0_i32_1 = arith.constant 0 : i32
    return %c0_i32, %c0_i32_0 : i32, i32
  }
  func.func @transform_2(%arg0: i32) -> (i32, i32) {
    %c0_i32 = arith.constant 0 : i32
    %c0_i32_0 = arith.constant 0 : i32
    %c0_i32_1 = arith.constant 0 : i32
    return %c0_i32, %c0_i32_0 : i32, i32
  }
  func.func @transform_3(%arg0: i32) -> (i32, i32) {
    %c0_i32 = arith.constant 0 : i32
    %c0_i32_0 = arith.constant 0 : i32
    %c0_i32_1 = arith.constant 0 : i32
    return %c0_i32, %c0_i32_0 : i32, i32
  }
  func.func @transform_4(%arg0: i32) -> (i32, i32) {
    %c0_i32 = arith.constant 0 : i32
    %c0_i32_0 = arith.constant 0 : i32
    return %arg0, %c0_i32 : i32, i32
  }
}

</mosaic_0001>

<llo_original>
// kernel: matmul_bn.1
$region0: #{matmul_bn.1}
  #allocation0 [shape = 'u32[]', space=smem, size = 0x4, offset = 0x4, fixed_abs, tag = 'smem constant byte address 0x4 - core index']
  #allocation1 [shape = 'u32[144,128]{1,0:T(1,128)}', space=vmem, size = 0x12000, scoped, tag = 'internal scratch']
  %s0 = inlined_call_operand.vmem [shape: bf16[2048,147], index: 0, kind: input, shape index: {}]
  %s1 = inlined_call_operand.vmem [shape: bf16[147,128], index: 1, kind: input, shape index: {}]
  %s2 = inlined_call_operand.vmem [shape: f32[1,128], index: 2, kind: input, shape index: {}]
  %s3 = inlined_call_operand.vmem [shape: f32[1,128], index: 3, kind: input, shape index: {}]
  %s4 = inlined_call_operand.hbm [shape: bf16[2048,128], index: 4, kind: output, shape index: {}]
  %s5 = sld [smem:[#allocation0]]
  $region49: #{matmul_bn.1} parent=0
    _
  %s7 = ssub.s32 1, %s5
  %s8 = scalar_select 0, %s7, %s5
  $region1: #{matmul_bn.1} parent=0
    #allocation2 [shape = 'u8[131072]{0}', space=vmem, size = 0x20000, scoped, tag = 'output window, operand 0']
    #allocation3 [shape = 's32[2]{0}', space=sflag, size = 0x8, scoped, tag = 'scoped memory for matmul_bn.1']
    %9 = vsyncpa [#allocation3], 0
    %s10 = scalar_lea.sflag [#allocation3], 1
    %11 = vsyncpa %s10, 0
    loop: start=0, step=1, limit=10
    $region2: #{matmul_bn.1} parent=1 // loop_pre_header
      _
    $region3: #{matmul_bn.1} parent=1 // loop_header
      %s13 = sphi 0, %s17
      %p14 = scmp.ge.s32.totalorder %s13, 10
      %s23 = sphi 0, %s25
      %s26 = sphi 0, %s23
      %s27 = sphi 0, %s26
      %s43 = sphi 0, %s27
      %s47 = sphi 0, %s47
      %s49 = sphi 0, %s47
      %s50 = sphi 0, %s49
      %s64 = sphi 0, %s50
      %s68 = sphi 0, %s68
      %s70 = sphi 0, %s68
      %s71 = sphi 0, %s70
      %s85 = sphi 0, %s71
      %s89 = sphi 0, %s89
      %s91 = sphi 0, %s89
      %s92 = sphi 0, %s91
      %s106 = sphi 0, %s92
      %s112 = sphi 0, %s114
      %s115 = sphi 0, %s112
      %s116 = sphi 0, %s115
      %s132 = sphi 0, %s116
    $region4: #{matmul_bn.1} parent=1 // loop_header_branch
      %16 = sbr.rel (%p14) target = $region8
    $region5: #{matmul_bn.1} parent=1 // loop_body
      %s18 = ssub.s32 %s13, 1
      %s19 = ssub.s32 %s13, 2
      %s20 = sadd.s32 %s13, 1
      %s21 = ssub.s32 %s13, %s20
      %p22 = scmp.eq.s32.totalorder %s21, 0
      %s24 = sadd.s32 %s23, 1
      %s25 = scalar_select %p22, %s23, %s24
      %p28 = pneg %p22
      %p29 = scmp.eq.s32.totalorder %s13, 7
      %p30 = por %p28, %p29
      %p31 = scmp.ne.s32.totalorder %s23, %s26
      %p32 = scmp.eq.s32.totalorder %s13, 0
      %p33 = por %p31, %p32
      %p34 = scmp.ne.s32.totalorder %s23, %s26
      %p35 = scmp.eq.s32.totalorder %s18, 7
      %p36 = por %p34, %p35
      %p37 = scmp.ne.s32.totalorder %s26, %s27
      %p38 = scmp.eq.s32.totalorder %s18, 0
      %p39 = por %p37, %p38
      %p40 = scmp.ne.s32.totalorder %s26, %s27
      %p41 = scmp.eq.s32.totalorder %s19, 7
      %p42 = por %p40, %p41
      %p44 = scmp.ne.s32.totalorder %s27, %s43
      %p45 = scmp.eq.s32.totalorder %s19, 0
      %p46 = por %p44, %p45
      %s48 = sadd.s32 %s47, 1
      %p51 = scmp.eq.s32.totalorder %s13, 7
      %p52 = scmp.ne.s32.totalorder %s47, %s49
      %p53 = scmp.eq.s32.totalorder %s13, 0
      %p54 = por %p52, %p53
      %p55 = scmp.ne.s32.totalorder %s47, %s49
      %p56 = scmp.eq.s32.totalorder %s18, 7
      %p57 = por %p55, %p56
      %p58 = scmp.ne.s32.totalorder %s49, %s50
      %p59 = scmp.eq.s32.totalorder %s18, 0
      %p60 = por %p58, %p59
      %p61 = scmp.ne.s32.totalorder %s49, %s50
      %p62 = scmp.eq.s32.totalorder %s19, 7
      %p63 = por %p61, %p62
      %p65 = scmp.ne.s32.totalorder %s50, %s64
      %p66 = scmp.eq.s32.totalorder %s19, 0
      %p67 = por %p65, %p66
      %s69 = sadd.s32 %s68, 1
      %p72 = scmp.eq.s32.totalorder %s13, 7
      %p73 = scmp.ne.s32.totalorder %s68, %s70
      %p74 = scmp.eq.s32.totalorder %s13, 0
      %p75 = por %p73, %p74
      %p76 = scmp.ne.s32.totalorder %s68, %s70
      %p77 = scmp.eq.s32.totalorder %s18, 7
      %p78 = por %p76, %p77
      %p79 = scmp.ne.s32.totalorder %s70, %s71
      %p80 = scmp.eq.s32.totalorder %s18, 0
      %p81 = por %p79, %p80
      %p82 = scmp.ne.s32.totalorder %s70, %s71
      %p83 = scmp.eq.s32.totalorder %s19, 7
      %p84 = por %p82, %p83
      %p86 = scmp.ne.s32.totalorder %s71, %s85
      %p87 = scmp.eq.s32.totalorder %s19, 0
      %p88 = por %p86, %p87
      %s90 = sadd.s32 %s89, 1
      %p93 = scmp.eq.s32.totalorder %s13, 7
      %p94 = scmp.ne.s32.totalorder %s89, %s91
      %p95 = scmp.eq.s32.totalorder %s13, 0
      %p96 = por %p94, %p95
      %p97 = scmp.ne.s32.totalorder %s89, %s91
      %p98 = scmp.eq.s32.totalorder %s18, 7
      %p99 = por %p97, %p98
      %p100 = scmp.ne.s32.totalorder %s91, %s92
      %p101 = scmp.eq.s32.totalorder %s18, 0
      %p102 = por %p100, %p101
      %p103 = scmp.ne.s32.totalorder %s91, %s92
      %p104 = scmp.eq.s32.totalorder %s19, 7
      %p105 = por %p103, %p104
      %p107 = scmp.ne.s32.totalorder %s92, %s106
      %p108 = scmp.eq.s32.totalorder %s19, 0
      %p109 = por %p107, %p108
      %s110 = ssub.s32 %s13, %s20
      %p111 = scmp.eq.s32.totalorder %s110, 0
      %s113 = sadd.s32 %s112, 1
      %s114 = scalar_select %p111, %s112, %s113
      %p117 = pneg %p111
      %p118 = scmp.eq.s32.totalorder %s13, 7
      %p119 = por %p117, %p118
      %p120 = scmp.ne.s32.totalorder %s112, %s115
      %p121 = scmp.eq.s32.totalorder %s13, 0
      %p122 = por %p120, %p121
      %p123 = scmp.ne.s32.totalorder %s112, %s115
      %p124 = scmp.eq.s32.totalorder %s18, 7
      %p125 = por %p123, %p124
      %p126 = scmp.ne.s32.totalorder %s115, %s116
      %p127 = scmp.eq.s32.totalorder %s18, 0
      %p128 = por %p126, %p127
      %p129 = scmp.ne.s32.totalorder %s115, %s116
      %p130 = scmp.eq.s32.totalorder %s19, 7
      %p131 = por %p129, %p130
      %p133 = scmp.ne.s32.totalorder %s116, %s132
      %p134 = scmp.eq.s32.totalorder %s19, 0
      %p135 = por %p133, %p134
      %p136 = scmp.le.s32.totalorder 1, %s13
      %p137 = scmp.lt.s32.totalorder %s13, 9
      %p138 = pnand %p136, %p137
      %p139 = pneg %p138
      // Predicated region
      $region9: #{matmul_bn.1} parent=5 // pred_check
        _
      $region10: #{matmul_bn.1} parent=5 // pred_check_branch
        %141 = sbr.rel (%p138) target = $region12
      $region11: #{matmul_bn.1} parent=5 // pred_region
        %s142 = ssub.s32 %s13, 1
        // Predicated region
        $region13: #{matmul_bn.1} parent=11 // pred_check
          %p143 = pneg %p60
        $region14: #{matmul_bn.1} parent=11 // pred_check_branch
          %145 = sbr.rel (%p143) target = $region16
        $region15: #{matmul_bn.1} parent=11 // pred_region
          _
        $region16: #{matmul_bn.1} parent=11 // pred_fallthru
          _
        // Predicated region
        $region17: #{matmul_bn.1} parent=11 // pred_check
          %p146 = pneg %p81
        $region18: #{matmul_bn.1} parent=11 // pred_check_branch
          %148 = sbr.rel (%p146) target = $region20
        $region19: #{matmul_bn.1} parent=11 // pred_region
          _
        $region20: #{matmul_bn.1} parent=11 // pred_fallthru
          _
        // Predicated region
        $region21: #{matmul_bn.1} parent=11 // pred_check
          %p149 = pneg %p102
        $region22: #{matmul_bn.1} parent=11 // pred_check_branch
          %151 = sbr.rel (%p149) target = $region24
        $region23: #{matmul_bn.1} parent=11 // pred_region
          _
        $region24: #{matmul_bn.1} parent=11 // pred_fallthru
          _
      $region12: #{matmul_bn.1} parent=5 // pred_fallthru
        _
      %p152 = scmp.lt.s32.totalorder %s13, 8
      // Predicated region
      $region25: #{matmul_bn.1} parent=5 // pred_check
        %p153 = pneg %p152
      $region26: #{matmul_bn.1} parent=5 // pred_check_branch
        %155 = sbr.rel (%p153) target = $region28
      $region27: #{matmul_bn.1} parent=5 // pred_region
        // Predicated region
        $region29: #{matmul_bn.1} parent=27 // pred_check
          %p156 = pneg %p33
        $region30: #{matmul_bn.1} parent=27 // pred_check_branch
          %158 = sbr.rel (%p156) target = $region32
        $region31: #{matmul_bn.1} parent=27 // pred_region
          %s159 = smul.u32 32, %s13
          %p160 = scmp.lt.s32.totalorder %s159, 255
          %s161 = scalar_select %p160, %s159, 255
          %s162 = smul.addr %s161, 2
          %s163 = smul.addr %s162, 4
          %s164 = scalar_lea.vmem %s0, %s163
          %s165 = smul.u32 32, %s13
        $region32: #{matmul_bn.1} parent=27 // pred_fallthru
          _
      $region28: #{matmul_bn.1} parent=5 // pred_fallthru
        _
      %p166 = scmp.le.s32.totalorder 1, %s13
      %p167 = scmp.lt.s32.totalorder %s13, 9
      %p168 = pnand %p166, %p167
      %p169 = pneg %p168
      // Predicated region
      $region33: #{matmul_bn.1} parent=5 // pred_check
        _
      $region34: #{matmul_bn.1} parent=5 // pred_check_branch
        %171 = sbr.rel (%p168) target = $region36
      $region35: #{matmul_bn.1} parent=5 // pred_region
        %s172 = ssub.s32 %s13, 1
        %s173 = smul.u32 32, %s18
        %p174 = scmp.lt.s32.totalorder %s173, 255
        %s175 = scalar_select %p174, %s173, 255
        %s176 = smul.addr %s175, 2
        %s177 = smul.addr %s176, 4
        %s178 = scalar_lea.vmem %s0, %s177
        %p179 = pneg %p39
        %p180 = pneg %p36
        %p181 = pneg %p60
        %p182 = pneg %p57
        %p183 = pneg %p81
        %p184 = pneg %p78
        %p185 = pneg %p102
        %p186 = pneg %p99
        %p187 = pneg %p128
        %p188 = pneg %p125
        %s189 = sand.u32 %s115, 1
        %s190 = scalar_lea.sflag [#allocation3], %s189
        %s191 = sand.u32 %s115, 1
        %s192 = smul.addr %s191, 128
        %s193 = scalar_lea.vmem [#allocation2], %s192
        %s194 = smul.u32 32, %s18
        %p195 = scmp.lt.s32.totalorder %s194, 255
        %s196 = scalar_select %p195, %s194, 255
        %s197 = smul.addr %s196, 2
        %s198 = smul.addr %s197, 4
        %s199 = scalar_lea.vmem %s0, %s198
        %s200 = smul.u32 32, %s18
        %s201 = smul.u32 32, %s18
        %v203 = vld [vmem:[%s199] sm:$0xff]
        %v204 = vld [vmem:[%s199 + $0x8] sm:$0xff]
        %v205 = vld [vmem:[%s199 + $0x10] sm:$0xff]
        %v206 = vld [vmem:[%s199 + $0x18] sm:$0xff]
        %v207 = vld [vmem:[%s199 + $0x20] sm:$0xff]
        %v208 = vld [vmem:[%s199 + $0x28] sm:$0xff]
        %v209 = vld [vmem:[%s199 + $0x30] sm:$0xff]
        %v210 = vld [vmem:[%s199 + $0x38] sm:$0xff]
        %v211 = vld [vmem:[%s199 + $0x40] sm:$0xff]
        %v212 = vld [vmem:[%s199 + $0x48] sm:$0xff]
        %v213 = vld [vmem:[%s199 + $0x50] sm:$0xff]
        %v214 = vld [vmem:[%s199 + $0x58] sm:$0xff]
        %v215 = vld [vmem:[%s199 + $0x60] sm:$0xff]
        %v216 = vld [vmem:[%s199 + $0x68] sm:$0xff]
        %v217 = vld [vmem:[%s199 + $0x70] sm:$0xff]
        %v218 = vld [vmem:[%s199 + $0x78] sm:$0xff]
        %v219 = vld [vmem:[%s199 + $0x80] sm:$0xff]
        %v220 = vld [vmem:[%s199 + $0x88] sm:$0xff]
        %v221 = vld [vmem:[%s199 + $0x90] sm:$0xff]
        %v222 = vld [vmem:[%s199 + $0x98] sm:$0xff]
        %v223 = vld [vmem:[%s199 + $0xa0] sm:$0xff]
        %v224 = vld [vmem:[%s199 + $0xa8] sm:$0xff]
        %v225 = vld [vmem:[%s199 + $0xb0] sm:$0xff]
        %v226 = vld [vmem:[%s199 + $0xb8] sm:$0xff]
        %v227 = vld [vmem:[%s199 + $0xc0] sm:$0xff]
        %v228 = vld [vmem:[%s199 + $0xc8] sm:$0xff]
        %v229 = vld [vmem:[%s199 + $0xd0] sm:$0xff]
        %v230 = vld [vmem:[%s199 + $0xd8] sm:$0xff]
        %v231 = vld [vmem:[%s199 + $0xe0] sm:$0xff]
        %v232 = vld [vmem:[%s199 + $0xe8] sm:$0xff]
        %v233 = vld [vmem:[%s199 + $0xf0] sm:$0xff]
        %v234 = vld [vmem:[%s199 + $0xf8] sm:$0xff]
        %v235 = vld [vmem:[%s1] sm:$0xf]
        %v236 = vld [vmem:[%s1 + $0x4] sm:$0xf]
        %v237 = vld [vmem:[%s1 + $0x8] sm:$0xf]
        %v238 = vld [vmem:[%s1 + $0xc] sm:$0xf]
        %v239 = vld [vmem:[%s1 + $0x10] sm:$0xf]
        %v240 = vld [vmem:[%s1 + $0x14] sm:$0xf]
        %v241 = vld [vmem:[%s1 + $0x18] sm:$0xf]
        %v242 = vld [vmem:[%s1 + $0x1c] sm:$0xf]
        %v243 = vld [vmem:[%s1 + $0x20] sm:$0xf]
        %v244 = vld [vmem:[%s1 + $0x24] sm:$0xf]
        %v245 = vld [vmem:[%s1 + $0x28] sm:$0xf]
        %v246 = vld [vmem:[%s1 + $0x2c] sm:$0xf]
        %v247 = vld [vmem:[%s1 + $0x30] sm:$0xf]
        %v248 = vld [vmem:[%s1 + $0x34] sm:$0xf]
        %v249 = vld [vmem:[%s1 + $0x38] sm:$0xf]
        %v250 = vld [vmem:[%s1 + $0x3c] sm:$0xf]
        %v251 = vld [vmem:[%s1 + $0x40] sm:$0xf]
        %v252 = vld [vmem:[%s1 + $0x44] sm:$0xf]
        %v253 = vld [vmem:[%s1 + $0x48] sm:$0x3]
        %v286 = vunpack.c.l.b16 %v203
        %v287 = vunpack.c.h.b16 %v203
        %v288 = vunpack.c.l.b16 %v204
        %v289 = vunpack.c.h.b16 %v204
        %v290 = vunpack.c.l.b16 %v205
        %v291 = vunpack.c.h.b16 %v205
        %v292 = vunpack.c.l.b16 %v206
        %v293 = vunpack.c.h.b16 %v206
        %v294 = vunpack.c.l.b16 %v207
        %v295 = vunpack.c.h.b16 %v207
        %v296 = vunpack.c.l.b16 %v208
        %v297 = vunpack.c.h.b16 %v208
        %v298 = vunpack.c.l.b16 %v209
        %v299 = vunpack.c.h.b16 %v209
        %v300 = vunpack.c.l.b16 %v210
        %v301 = vunpack.c.h.b16 %v210
        %v302 = vunpack.c.l.b16 %v211
        %v303 = vunpack.c.h.b16 %v211
        %v304 = vunpack.c.l.b16 %v212
        %v305 = vunpack.c.h.b16 %v212
        %v306 = vunpack.c.l.b16 %v213
        %v307 = vunpack.c.h.b16 %v213
        %v308 = vunpack.c.l.b16 %v214
        %v309 = vunpack.c.h.b16 %v214
        %v310 = vunpack.c.l.b16 %v215
        %v311 = vunpack.c.h.b16 %v215
        %v312 = vunpack.c.l.b16 %v216
        %v313 = vunpack.c.h.b16 %v216
        %v314 = vunpack.c.l.b16 %v217
        %v315 = vunpack.c.h.b16 %v217
        %v316 = vunpack.c.l.b16 %v218
        %v317 = vunpack.c.h.b16 %v218
        %v318 = vunpack.c.l.b16 %v219
        %v319 = vunpack.c.h.b16 %v219
        %v320 = vunpack.c.l.b16 %v220
        %v321 = vunpack.c.h.b16 %v220
        %v322 = vunpack.c.l.b16 %v221
        %v323 = vunpack.c.h.b16 %v221
        %v324 = vunpack.c.l.b16 %v222
        %v325 = vunpack.c.h.b16 %v222
        %v326 = vunpack.c.l.b16 %v223
        %v327 = vunpack.c.h.b16 %v223
        %v328 = vunpack.c.l.b16 %v224
        %v329 = vunpack.c.h.b16 %v224
        %v330 = vunpack.c.l.b16 %v225
        %v331 = vunpack.c.h.b16 %v225
        %v332 = vunpack.c.l.b16 %v226
        %v333 = vunpack.c.h.b16 %v226
        %v334 = vunpack.c.l.b16 %v227
        %v335 = vunpack.c.h.b16 %v227
        %v336 = vunpack.c.l.b16 %v228
        %v337 = vunpack.c.h.b16 %v228
        %v338 = vunpack.c.l.b16 %v229
        %v339 = vunpack.c.h.b16 %v229
        %v340 = vunpack.c.l.b16 %v230
        %v341 = vunpack.c.h.b16 %v230
        %v342 = vunpack.c.l.b16 %v231
        %v343 = vunpack.c.h.b16 %v231
        %v344 = vunpack.c.l.b16 %v232
        %v345 = vunpack.c.h.b16 %v232
        %v346 = vunpack.c.l.b16 %v233
        %v347 = vunpack.c.h.b16 %v233
        %v348 = vunpack.c.l.b16 %v234
        %v349 = vunpack.c.h.b16 %v234
        %v350 = vpack.c.b16 %v288, %v286
        %v351 = vpack.c.b16 %v289, %v287
        %v352 = vpack.c.b16 %v292, %v290
        %v353 = vpack.c.b16 %v293, %v291
        %v354 = vpack.c.b16 %v296, %v294
        %v355 = vpack.c.b16 %v297, %v295
        %v356 = vpack.c.b16 %v300, %v298
        %v357 = vpack.c.b16 %v301, %v299
        %v358 = vpack.c.b16 %v304, %v302
        %v359 = vpack.c.b16 %v305, %v303
        %v360 = vpack.c.b16 %v308, %v306
        %v361 = vpack.c.b16 %v309, %v307
        %v362 = vpack.c.b16 %v312, %v310
        %v363 = vpack.c.b16 %v313, %v311
        %v364 = vpack.c.b16 %v316, %v314
        %v365 = vpack.c.b16 %v317, %v315
        %v366 = vpack.c.b16 %v320, %v318
        %v367 = vpack.c.b16 %v321, %v319
        %v368 = vpack.c.b16 %v324, %v322
        %v369 = vpack.c.b16 %v325, %v323
        %v370 = vpack.c.b16 %v328, %v326
        %v371 = vpack.c.b16 %v329, %v327
        %v372 = vpack.c.b16 %v332, %v330
        %v373 = vpack.c.b16 %v333, %v331
        %v374 = vpack.c.b16 %v336, %v334
        %v375 = vpack.c.b16 %v337, %v335
        %v376 = vpack.c.b16 %v340, %v338
        %v377 = vpack.c.b16 %v341, %v339
        %v378 = vpack.c.b16 %v344, %v342
        %v379 = vpack.c.b16 %v345, %v343
        %v380 = vpack.c.b16 %v348, %v346
        %v381 = vpack.c.b16 %v349, %v347
        %v417 = vunpack.c.l.b16 %v235
        %v418 = vunpack.c.l.b16 %v236
        %v419 = vunpack.c.l.b16 %v237
        %v420 = vunpack.c.l.b16 %v238
        %v421 = vunpack.c.l.b16 %v239
        %v422 = vunpack.c.l.b16 %v240
        %v423 = vunpack.c.l.b16 %v241
        %v424 = vunpack.c.l.b16 %v242
        %v425 = vunpack.c.l.b16 %v243
        %v426 = vunpack.c.l.b16 %v244
        %v427 = vunpack.c.l.b16 %v245
        %v428 = vunpack.c.l.b16 %v246
        %v429 = vunpack.c.l.b16 %v247
        %v430 = vunpack.c.l.b16 %v248
        %v431 = vunpack.c.l.b16 %v249
        %v432 = vunpack.c.l.b16 %v250
        %v433 = vunpack.c.l.b16 %v251
        %v434 = vunpack.c.l.b16 %v252
        %v435 = vunpack.c.l.b16 %v253
        %v436 = vpack.c.b16 %v418, %v417
        %v437 = vpack.c.b16 %v420, %v419
        %v438 = vpack.c.b16 %v422, %v421
        %v439 = vpack.c.b16 %v424, %v423
        %v440 = vpack.c.b16 %v426, %v425
        %v441 = vpack.c.b16 %v428, %v427
        %v442 = vpack.c.b16 %v430, %v429
        %v443 = vpack.c.b16 %v432, %v431
        %v444 = vpack.c.b16 %v434, %v433
        %v445 = vpack.c.b16 %v435, %v435
        %vm455 = vcmask 154624
        %v457 = vsel %vm455, %v351, 0
        %v460 = vsel %vm455, %v353, 0
        %v463 = vsel %vm455, %v355, 0
        %v466 = vsel %vm455, %v357, 0
        %v469 = vsel %vm455, %v359, 0
        %v472 = vsel %vm455, %v361, 0
        %v475 = vsel %vm455, %v363, 0
        %v478 = vsel %vm455, %v365, 0
        %v481 = vsel %vm455, %v367, 0
        %v484 = vsel %vm455, %v369, 0
        %v487 = vsel %vm455, %v371, 0
        %v490 = vsel %vm455, %v373, 0
        %v493 = vsel %vm455, %v375, 0
        %v496 = vsel %vm455, %v377, 0
        %v499 = vsel %vm455, %v379, 0
        %v502 = vsel %vm455, %v381, 0
        %vm504 = vcmask 1040384
        %vm505 = vcmask 1041408
        %v506 = vsel %vm504, 4294967295, 65535
        %v507 = vsel %vm505, %v506, 0
        %v509 = vand.u32 %v445, %v507
        %511 = vmatprep.subr.bf16.mxu0 0
        %512 = vmatpush1.bf16.msra.mxu0 %v436
        %513 = vmatprep.subr.bf16.mxu0 0
        %514 = vmatpush1.bf16.msra.mxu0 %v437
        %515 = vmatprep.subr.bf16.mxu0 0
        %516 = vmatpush1.bf16.msra.mxu0 %v438
        %517 = vmatprep.subr.bf16.mxu0 0
        %518 = vmatpush1.bf16.msra.mxu0 %v439
        %519 = vmatprep.subr.bf16.mxu0 0
        %520 = vmatpush1.bf16.msra.mxu0 %v440
        %521 = vmatprep.subr.bf16.mxu0 0
        %522 = vmatpush1.bf16.msra.mxu0 %v441
        %523 = vmatprep.subr.bf16.mxu0 0
        %524 = vmatpush1.bf16.msra.mxu0 %v442
        %525 = vmatprep.subr.bf16.mxu0 0
        %526 = vmatpush1.bf16.msra.mxu0 %v443
        %527 = vmatprep.subr.bf16.mxu0 0
        %528 = vmatpush1.bf16.msra.mxu0 %v444
        %529 = vmatprep.subr.bf16.mxu0 0
        %530 = vmatpush1.bf16.msra.mxu0 %v509
        %531 = vmatprep.subr.bf16.mxu0 0
        %532 = vmatpush1.bf16.msra.mxu0 0
        %533 = vmatprep.subr.bf16.mxu0 0
        %534 = vmatpush1.bf16.msra.mxu0 0
        %535 = vmatprep.subr.bf16.mxu0 0
        %536 = vmatpush1.bf16.msra.mxu0 0
        %537 = vmatprep.subr.bf16.mxu0 0
        %538 = vmatpush1.bf16.msra.mxu0 0
        %539 = vmatprep.subr.bf16.mxu0 0
        %540 = vmatpush1.bf16.msra.mxu0 0
        %541 = vmatprep.subr.bf16.mxu0 0
        %542 = vmatpush1.bf16.msra.mxu0 0
        %543 = vmatprep.mubr.bf16.mxu0 %v457
        %544 = vmatmul.mubr.bf16.gmra.mrb[0].mxu0 %v350
        %v545 = vpop.f32.mrb[0].mxu0
        %v546 = vadd.f32 0.0, %v545
        %v547 = vpop.f32.mrb[0].mxu0
        %v548 = vpop.f32.mrb[0].mxu0
        %v549 = vadd.f32 0.0, %v548
        %v550 = vpop.f32.mrb[0].mxu0
        %551 = vmatprep.mubr.bf16.mxu0 %v460
        %552 = vmatmul.mubr.bf16.gmra.mrb[0].mxu0 %v352
        %v553 = vpop.f32.mrb[0].mxu0
        %v554 = vadd.f32 0.0, %v553
        %v555 = vpop.f32.mrb[0].mxu0
        %v556 = vpop.f32.mrb[0].mxu0
        %v557 = vadd.f32 0.0, %v556
        %v558 = vpop.f32.mrb[0].mxu0
        %559 = vmatprep.mubr.bf16.mxu0 %v463
        %560 = vmatmul.mubr.bf16.gmra.mrb[0].mxu0 %v354
        %v561 = vpop.f32.mrb[0].mxu0
        %v562 = vadd.f32 0.0, %v561
        %v563 = vpop.f32.mrb[0].mxu0
        %v564 = vpop.f32.mrb[0].mxu0
        %v565 = vadd.f32 0.0, %v564
        %v566 = vpop.f32.mrb[0].mxu0
        %567 = vmatprep.mubr.bf16.mxu0 %v466
        %568 = vmatmul.mubr.bf16.gmra.mrb[0].mxu0 %v356
        %v569 = vpop.f32.mrb[0].mxu0
        %v570 = vadd.f32 0.0, %v569
        %v571 = vpop.f32.mrb[0].mxu0
        %v572 = vpop.f32.mrb[0].mxu0
        %v573 = vadd.f32 0.0, %v572
        %v574 = vpop.f32.mrb[0].mxu0
        %575 = vmatprep.mubr.bf16.mxu0 %v469
        %576 = vmatmul.mubr.bf16.gmra.mrb[0].mxu0 %v358
        %v577 = vpop.f32.mrb[0].mxu0
        %v578 = vadd.f32 0.0, %v577
        %v579 = vpop.f32.mrb[0].mxu0
        %v580 = vpop.f32.mrb[0].mxu0
        %v581 = vadd.f32 0.0, %v580
        %v582 = vpop.f32.mrb[0].mxu0
        %583 = vmatprep.mubr.bf16.mxu0 %v472
        %584 = vmatmul.mubr.bf16.gmra.mrb[0].mxu0 %v360
        %v585 = vpop.f32.mrb[0].mxu0
        %v586 = vadd.f32 0.0, %v585
        %v587 = vpop.f32.mrb[0].mxu0
        %v588 = vpop.f32.mrb[0].mxu0
        %v589 = vadd.f32 0.0, %v588
        %v590 = vpop.f32.mrb[0].mxu0
        %591 = vmatprep.mubr.bf16.mxu0 %v475
        %592 = vmatmul.mubr.bf16.gmra.mrb[0].mxu0 %v362
        %v593 = vpop.f32.mrb[0].mxu0
        %v594 = vadd.f32 0.0, %v593
        %v595 = vpop.f32.mrb[0].mxu0
        %v596 = vpop.f32.mrb[0].mxu0
        %v597 = vadd.f32 0.0, %v596
        %v598 = vpop.f32.mrb[0].mxu0
        %599 = vmatprep.mubr.bf16.mxu0 %v478
        %600 = vmatmul.mubr.bf16.gmra.mrb[0].mxu0 %v364
        %v601 = vpop.f32.mrb[0].mxu0
        %v602 = vadd.f32 0.0, %v601
        %v603 = vpop.f32.mrb[0].mxu0
        %v604 = vpop.f32.mrb[0].mxu0
        %v605 = vadd.f32 0.0, %v604
        %v606 = vpop.f32.mrb[0].mxu0
        %607 = vmatprep.mubr.bf16.mxu0 %v481
        %608 = vmatmul.mubr.bf16.gmra.mrb[0].mxu0 %v366
        %v609 = vpop.f32.mrb[0].mxu0
        %v610 = vadd.f32 0.0, %v609
        %v611 = vpop.f32.mrb[0].mxu0
        %v612 = vpop.f32.mrb[0].mxu0
        %v613 = vadd.f32 0.0, %v612
        %v614 = vpop.f32.mrb[0].mxu0
        %615 = vmatprep.mubr.bf16.mxu0 %v484
        %616 = vmatmul.mubr.bf16.gmra.mrb[0].mxu0 %v368
        %v617 = vpop.f32.mrb[0].mxu0
        %v618 = vadd.f32 0.0, %v617
        %v619 = vpop.f32.mrb[0].mxu0
        %v620 = vpop.f32.mrb[0].mxu0
        %v621 = vadd.f32 0.0, %v620
        %v622 = vpop.f32.mrb[0].mxu0
        %623 = vmatprep.mubr.bf16.mxu0 %v487
        %624 = vmatmul.mubr.bf16.gmra.mrb[0].mxu0 %v370
        %v625 = vpop.f32.mrb[0].mxu0
        %v626 = vadd.f32 0.0, %v625
        %v627 = vpop.f32.mrb[0].mxu0
        %v628 = vpop.f32.mrb[0].mxu0
        %v629 = vadd.f32 0.0, %v628
        %v630 = vpop.f32.mrb[0].mxu0
        %631 = vmatprep.mubr.bf16.mxu0 %v490
        %632 = vmatmul.mubr.bf16.gmra.mrb[0].mxu0 %v372
        %v633 = vpop.f32.mrb[0].mxu0
        %v634 = vadd.f32 0.0, %v633
        %v635 = vpop.f32.mrb[0].mxu0
        %v636 = vpop.f32.mrb[0].mxu0
        %v637 = vadd.f32 0.0, %v636
        %v638 = vpop.f32.mrb[0].mxu0
        %639 = vmatprep.mubr.bf16.mxu0 %v493
        %640 = vmatmul.mubr.bf16.gmra.mrb[0].mxu0 %v374
        %v641 = vpop.f32.mrb[0].mxu0
        %v642 = vadd.f32 0.0, %v641
        %v643 = vpop.f32.mrb[0].mxu0
        %v644 = vpop.f32.mrb[0].mxu0
        %v645 = vadd.f32 0.0, %v644
        %v646 = vpop.f32.mrb[0].mxu0
        %647 = vmatprep.mubr.bf16.mxu0 %v496
        %648 = vmatmul.mubr.bf16.gmra.mrb[0].mxu0 %v376
        %v649 = vpop.f32.mrb[0].mxu0
        %v650 = vadd.f32 0.0, %v649
        %v651 = vpop.f32.mrb[0].mxu0
        %v652 = vpop.f32.mrb[0].mxu0
        %v653 = vadd.f32 0.0, %v652
        %v654 = vpop.f32.mrb[0].mxu0
        %655 = vmatprep.mubr.bf16.mxu0 %v499
        %656 = vmatmul.mubr.bf16.gmra.mrb[0].mxu0 %v378
        %v657 = vpop.f32.mrb[0].mxu0
        %v658 = vadd.f32 0.0, %v657
        %v659 = vpop.f32.mrb[0].mxu0
        %v660 = vpop.f32.mrb[0].mxu0
        %v661 = vadd.f32 0.0, %v660
        %v662 = vpop.f32.mrb[0].mxu0
        %663 = vmatprep.mubr.bf16.mxu0 %v502
        %664 = vmatmul.mubr.bf16.gmra.mrb[0].mxu0 %v380
        %v665 = vpop.f32.mrb[0].mxu0
        %v666 = vadd.f32 0.0, %v665
        %v667 = vpop.f32.mrb[0].mxu0
        %v668 = vpop.f32.mrb[0].mxu0
        %v669 = vadd.f32 0.0, %v668
        %v670 = vpop.f32.mrb[0].mxu0
        %671 = vdwg.mxu0
        %v672 = vld [vmem:[%s2] sm:$0x1]
        %v674 = vlaneseq
        %v675 = vshrl.u32 %v674, 7
        %v676 = vsub.s32 0, %v675
        %v677 = vrot.slane %v672, %v676
        %v679 = vmul.f32 %v546, %v677
        %v680 = vmul.f32 %v549, %v677
        %v681 = vmul.f32 %v554, %v677
        %v682 = vmul.f32 %v557, %v677
        %v683 = vmul.f32 %v562, %v677
        %v684 = vmul.f32 %v565, %v677
        %v685 = vmul.f32 %v570, %v677
        %v686 = vmul.f32 %v573, %v677
        %v687 = vmul.f32 %v578, %v677
        %v688 = vmul.f32 %v581, %v677
        %v689 = vmul.f32 %v586, %v677
        %v690 = vmul.f32 %v589, %v677
        %v691 = vmul.f32 %v594, %v677
        %v692 = vmul.f32 %v597, %v677
        %v693 = vmul.f32 %v602, %v677
        %v694 = vmul.f32 %v605, %v677
        %v695 = vmul.f32 %v610, %v677
        %v696 = vmul.f32 %v613, %v677
        %v697 = vmul.f32 %v618, %v677
        %v698 = vmul.f32 %v621, %v677
        %v699 = vmul.f32 %v626, %v677
        %v700 = vmul.f32 %v629, %v677
        %v701 = vmul.f32 %v634, %v677
        %v702 = vmul.f32 %v637, %v677
        %v703 = vmul.f32 %v642, %v677
        %v704 = vmul.f32 %v645, %v677
        %v705 = vmul.f32 %v650, %v677
        %v706 = vmul.f32 %v653, %v677
        %v707 = vmul.f32 %v658, %v677
        %v708 = vmul.f32 %v661, %v677
        %v709 = vmul.f32 %v666, %v677
        %v710 = vmul.f32 %v669, %v677
        %v711 = vld [vmem:[%s3] sm:$0x1]
        %v713 = vlaneseq
        %v714 = vshrl.u32 %v713, 7
        %v715 = vsub.s32 0, %v714
        %v716 = vrot.slane %v711, %v715
        %v718 = vadd.f32 %v679, %v716
        %v719 = vadd.f32 %v680, %v716
        %v720 = vadd.f32 %v681, %v716
        %v721 = vadd.f32 %v682, %v716
        %v722 = vadd.f32 %v683, %v716
        %v723 = vadd.f32 %v684, %v716
        %v724 = vadd.f32 %v685, %v716
        %v725 = vadd.f32 %v686, %v716
        %v726 = vadd.f32 %v687, %v716
        %v727 = vadd.f32 %v688, %v716
        %v728 = vadd.f32 %v689, %v716
        %v729 = vadd.f32 %v690, %v716
        %v730 = vadd.f32 %v691, %v716
        %v731 = vadd.f32 %v692, %v716
        %v732 = vadd.f32 %v693, %v716
        %v733 = vadd.f32 %v694, %v716
        %v734 = vadd.f32 %v695, %v716
        %v735 = vadd.f32 %v696, %v716
        %v736 = vadd.f32 %v697, %v716
        %v737 = vadd.f32 %v698, %v716
        %v738 = vadd.f32 %v699, %v716
        %v739 = vadd.f32 %v700, %v716
        %v740 = vadd.f32 %v701, %v716
        %v741 = vadd.f32 %v702, %v716
        %v742 = vadd.f32 %v703, %v716
        %v743 = vadd.f32 %v704, %v716
        %v744 = vadd.f32 %v705, %v716
        %v745 = vadd.f32 %v706, %v716
        %v746 = vadd.f32 %v707, %v716
        %v747 = vadd.f32 %v708, %v716
        %v748 = vadd.f32 %v709, %v716
        %v749 = vadd.f32 %v710, %v716
        %v750 = vmax.f32 %v718, 0.0
        %v751 = vmax.f32 %v719, 0.0
        %v752 = vmax.f32 %v720, 0.0
        %v753 = vmax.f32 %v721, 0.0
        %v754 = vmax.f32 %v722, 0.0
        %v755 = vmax.f32 %v723, 0.0
        %v756 = vmax.f32 %v724, 0.0
        %v757 = vmax.f32 %v725, 0.0
        %v758 = vmax.f32 %v726, 0.0
        %v759 = vmax.f32 %v727, 0.0
        %v760 = vmax.f32 %v728, 0.0
        %v761 = vmax.f32 %v729, 0.0
        %v762 = vmax.f32 %v730, 0.0
        %v763 = vmax.f32 %v731, 0.0
        %v764 = vmax.f32 %v732, 0.0
        %v765 = vmax.f32 %v733, 0.0
        %v766 = vmax.f32 %v734, 0.0
        %v767 = vmax.f32 %v735, 0.0
        %v768 = vmax.f32 %v736, 0.0
        %v769 = vmax.f32 %v737, 0.0
        %v770 = vmax.f32 %v738, 0.0
        %v771 = vmax.f32 %v739, 0.0
        %v772 = vmax.f32 %v740, 0.0
        %v773 = vmax.f32 %v741, 0.0
        %v774 = vmax.f32 %v742, 0.0
        %v775 = vmax.f32 %v743, 0.0
        %v776 = vmax.f32 %v744, 0.0
        %v777 = vmax.f32 %v745, 0.0
        %v778 = vmax.f32 %v746, 0.0
        %v779 = vmax.f32 %v747, 0.0
        %v780 = vmax.f32 %v748, 0.0
        %v781 = vmax.f32 %v749, 0.0
        %v782 = vpack.c.bf16 %v751, %v750
        %v783 = vpack.c.bf16 %v753, %v752
        %v784 = vpack.c.bf16 %v755, %v754
        %v785 = vpack.c.bf16 %v757, %v756
        %v786 = vpack.c.bf16 %v759, %v758
        %v787 = vpack.c.bf16 %v761, %v760
        %v788 = vpack.c.bf16 %v763, %v762
        %v789 = vpack.c.bf16 %v765, %v764
        %v790 = vpack.c.bf16 %v767, %v766
        %v791 = vpack.c.bf16 %v769, %v768
        %v792 = vpack.c.bf16 %v771, %v770
        %v793 = vpack.c.bf16 %v773, %v772
        %v794 = vpack.c.bf16 %v775, %v774
        %v795 = vpack.c.bf16 %v777, %v776
        %v796 = vpack.c.bf16 %v779, %v778
        %v797 = vpack.c.bf16 %v781, %v780
        %v814 = vunpack.c.l.b16 %v782
        %v815 = vunpack.c.h.b16 %v782
        %v816 = vunpack.c.l.b16 %v783
        %v817 = vunpack.c.h.b16 %v783
        %v818 = vunpack.c.l.b16 %v784
        %v819 = vunpack.c.h.b16 %v784
        %v820 = vunpack.c.l.b16 %v785
        %v821 = vunpack.c.h.b16 %v785
        %v822 = vunpack.c.l.b16 %v786
        %v823 = vunpack.c.h.b16 %v786
        %v824 = vunpack.c.l.b16 %v787
        %v825 = vunpack.c.h.b16 %v787
        %v826 = vunpack.c.l.b16 %v788
        %v827 = vunpack.c.h.b16 %v788
        %v828 = vunpack.c.l.b16 %v789
        %v829 = vunpack.c.h.b16 %v789
        %v830 = vunpack.c.l.b16 %v790
        %v831 = vunpack.c.h.b16 %v790
        %v832 = vunpack.c.l.b16 %v791
        %v833 = vunpack.c.h.b16 %v791
        %v834 = vunpack.c.l.b16 %v792
        %v835 = vunpack.c.h.b16 %v792
        %v836 = vunpack.c.l.b16 %v793
        %v837 = vunpack.c.h.b16 %v793
        %v838 = vunpack.c.l.b16 %v794
        %v839 = vunpack.c.h.b16 %v794
        %v840 = vunpack.c.l.b16 %v795
        %v841 = vunpack.c.h.b16 %v795
        %v842 = vunpack.c.l.b16 %v796
        %v843 = vunpack.c.h.b16 %v796
        %v844 = vunpack.c.l.b16 %v797
        %v845 = vunpack.c.h.b16 %v797
        %v846 = vpack.c.b16 %v814, %v814
        %v847 = vpack.c.b16 %v815, %v815
        %v848 = vpack.c.b16 %v816, %v816
        %v849 = vpack.c.b16 %v817, %v817
        %v850 = vpack.c.b16 %v818, %v818
        %v851 = vpack.c.b16 %v819, %v819
        %v852 = vpack.c.b16 %v820, %v820
        %v853 = vpack.c.b16 %v821, %v821
        %v854 = vpack.c.b16 %v822, %v822
        %v855 = vpack.c.b16 %v823, %v823
        %v856 = vpack.c.b16 %v824, %v824
        %v857 = vpack.c.b16 %v825, %v825
        %v858 = vpack.c.b16 %v826, %v826
        %v859 = vpack.c.b16 %v827, %v827
        %v860 = vpack.c.b16 %v828, %v828
        %v861 = vpack.c.b16 %v829, %v829
        %v862 = vpack.c.b16 %v830, %v830
        %v863 = vpack.c.b16 %v831, %v831
        %v864 = vpack.c.b16 %v832, %v832
        %v865 = vpack.c.b16 %v833, %v833
        %v866 = vpack.c.b16 %v834, %v834
        %v867 = vpack.c.b16 %v835, %v835
        %v868 = vpack.c.b16 %v836, %v836
        %v869 = vpack.c.b16 %v837, %v837
        %v870 = vpack.c.b16 %v838, %v838
        %v871 = vpack.c.b16 %v839, %v839
        %v872 = vpack.c.b16 %v840, %v840
        %v873 = vpack.c.b16 %v841, %v841
        %v874 = vpack.c.b16 %v842, %v842
        %v875 = vpack.c.b16 %v843, %v843
        %v876 = vpack.c.b16 %v844, %v844
        %v877 = vpack.c.b16 %v845, %v845
        %910 = vst [vmem:[%s193] sm:$0xf] %v846
        %911 = vst [vmem:[%s193 + $0x4] sm:$0xf] %v847
        %912 = vst [vmem:[%s193 + $0x8] sm:$0xf] %v848
        %913 = vst [vmem:[%s193 + $0xc] sm:$0xf] %v849
        %914 = vst [vmem:[%s193 + $0x10] sm:$0xf] %v850
        %915 = vst [vmem:[%s193 + $0x14] sm:$0xf] %v851
        %916 = vst [vmem:[%s193 + $0x18] sm:$0xf] %v852
        %917 = vst [vmem:[%s193 + $0x1c] sm:$0xf] %v853
        %918 = vst [vmem:[%s193 + $0x20] sm:$0xf] %v854
        %919 = vst [vmem:[%s193 + $0x24] sm:$0xf] %v855
        %920 = vst [vmem:[%s193 + $0x28] sm:$0xf] %v856
        %921 = vst [vmem:[%s193 + $0x2c] sm:$0xf] %v857
        %922 = vst [vmem:[%s193 + $0x30] sm:$0xf] %v858
        %923 = vst [vmem:[%s193 + $0x34] sm:$0xf] %v859
        %924 = vst [vmem:[%s193 + $0x38] sm:$0xf] %v860
        %925 = vst [vmem:[%s193 + $0x3c] sm:$0xf] %v861
        %926 = vst [vmem:[%s193 + $0x40] sm:$0xf] %v862
        %927 = vst [vmem:[%s193 + $0x44] sm:$0xf] %v863
        %928 = vst [vmem:[%s193 + $0x48] sm:$0xf] %v864
        %929 = vst [vmem:[%s193 + $0x4c] sm:$0xf] %v865
        %930 = vst [vmem:[%s193 + $0x50] sm:$0xf] %v866
        %931 = vst [vmem:[%s193 + $0x54] sm:$0xf] %v867
        %932 = vst [vmem:[%s193 + $0x58] sm:$0xf] %v868
        %933 = vst [vmem:[%s193 + $0x5c] sm:$0xf] %v869
        %934 = vst [vmem:[%s193 + $0x60] sm:$0xf] %v870
        %935 = vst [vmem:[%s193 + $0x64] sm:$0xf] %v871
        %936 = vst [vmem:[%s193 + $0x68] sm:$0xf] %v872
        %937 = vst [vmem:[%s193 + $0x6c] sm:$0xf] %v873
        %938 = vst [vmem:[%s193 + $0x70] sm:$0xf] %v874
        %939 = vst [vmem:[%s193 + $0x74] sm:$0xf] %v875
        %940 = vst [vmem:[%s193 + $0x78] sm:$0xf] %v876
        %941 = vst [vmem:[%s193 + $0x7c] sm:$0xf] %v877
        %s942 = sand.u32 %s115, 1
        %s943 = scalar_lea.sflag [#allocation3], %s942
        %s944 = sand.u32 %s115, 1
        %s945 = smul.addr %s944, 128
        %s946 = scalar_lea.vmem [#allocation2], %s945
        // Predicated region
        $region37: #{matmul_bn.1} parent=35 // pred_check
          %p947 = pneg %p125
        $region38: #{matmul_bn.1} parent=35 // pred_check_branch
          %949 = sbr.rel (%p947) target = $region40
        $region39: #{matmul_bn.1} parent=35 // pred_region
          %s950 = smul.u32 32, %s18
          %s952 = ssub.s32 2048, 2048
          %953 = vsyncadd %s943, %s952
          %s954 = smul.addr %s950, 64
          %s955 = scalar_lea.hbm %s4, %s954
          %s956 = sshll.u32 %s946, 4
          %s957 = int_to_ptr.vmem [resolvable:$true] %s956
          %962 = dma.vmem_to_hbm [thread:$0]  %s957, 2048, %s955, %s943, 64, 64, 4
        $region40: #{matmul_bn.1} parent=35 // pred_fallthru
          _
      $region36: #{matmul_bn.1} parent=5 // pred_fallthru
        _
      %p963 = scmp.le.s32.totalorder 2, %s13
      // Predicated region
      $region41: #{matmul_bn.1} parent=5 // pred_check
        %p964 = pneg %p963
      $region42: #{matmul_bn.1} parent=5 // pred_check_branch
        %966 = sbr.rel (%p964) target = $region44
      $region43: #{matmul_bn.1} parent=5 // pred_region
        %s967 = ssub.s32 %s13, 2
        // Predicated region
        $region45: #{matmul_bn.1} parent=43 // pred_check
          %p968 = pneg %p131
        $region46: #{matmul_bn.1} parent=43 // pred_check_branch
          %970 = sbr.rel (%p968) target = $region48
        $region47: #{matmul_bn.1} parent=43 // pred_region
          %s971 = sand.u32 %s116, 1
          %s972 = scalar_lea.sflag [#allocation3], %s971
          %s973 = sand.u32 %s116, 1
          %s974 = smul.addr %s973, 128
          %s975 = scalar_lea.vmem [#allocation2], %s974
          %976 = dma.done %s972, 2048
        $region48: #{matmul_bn.1} parent=43 // pred_fallthru
          _
      $region44: #{matmul_bn.1} parent=5 // pred_fallthru
        _
    $region6: #{matmul_bn.1} parent=1 // loop_footer
      %s17 = sadd.s32 1, %s13
    $region7: #{matmul_bn.1} parent=1 // loop_footer_branch
      %12 = sbr.rel target = $region3
    $region8: #{matmul_bn.1} parent=1 // loop_exit
      _
    %977 = vsyncpa [#allocation3], 1
    %s978 = scalar_lea.sflag [#allocation3], 1
    %979 = vsyncpa %s978, 1

</llo_original>
